<compile_context>
chip_gen: v5e
topology: v5e:2x2
jax: 0.10.0
libtpu: 0.0.40
codegen_flags: <defaults>
</compile_context>

<pallas_src>
import functools

import jax
import jax.numpy as jnp
import numpy as np
from jax.experimental import pallas as pl
from jax.experimental.pallas import tpu as pltpu


def _prompt_learner_kernel(x_ref, w1_ref, b1_ref, w2_ref, b2_ref, ctx_ref,
                           tmpl_ref, out_ref, ctx_vmem, dma_sem,
                           *, n_ctx: int, block_b: int):
    # tmpl_ref is the same HBM buffer as out_ref (donated, pre-filled with the
    # batch-invariant prefix/suffix rows); we never need to read it in the kernel.
    del tmpl_ref

    # ---- meta_net MLP: bias = Linear2(ReLU(Linear1(im_features))) ----
    # hidden = vis_dim // 16 is tiny; keep both dots fused in one step so the Mosaic
    # scheduler hides them under the output DMA (no extra reduction grid axis).
    x = x_ref[...]                                                      # (TB, vis_dim)
    h = jnp.dot(x, w1_ref[...], preferred_element_type=jnp.float32) + b1_ref[...]
    h = jnp.maximum(h, 0.0)                                             # (TB, hidden)
    bias = jnp.dot(h, w2_ref[...], preferred_element_type=jnp.float32) + b2_ref[...]
    # bias: (TB, ctx_dim)

    # ---- ctx.unsqueeze(0) + bias.unsqueeze(1): the only batch-dependent rows ----
    ctx_vmem[...] = (ctx_ref[...][None, :, :] + bias[:, None, :]).astype(ctx_vmem.dtype)

    # ---- write ONLY the n_ctx context rows of this batch tile ----
    # Prefix/suffix rows already live in the donated template buffer, so the
    # replicated ~(seq_len - n_ctx)/seq_len of the writeback is skipped entirely.
    row0 = pl.multiple_of(pl.program_id(0) * block_b, block_b)
    cp = pltpu.make_async_copy(
        ctx_vmem,
        out_ref.at[pl.ds(row0, block_b), pl.ds(1, n_ctx), :],
        dma_sem)
    cp.start()
    cp.wait()


def make_prompt_template(batch, token_prefix, token_suffix, n_ctx, dtype):
    """(B, 1+n_ctx+suffix_len, ctx_dim) buffer with prefix/suffix filled, ctx rows zero.

    prefix/suffix are frozen buffers, so this can be built ONCE and cached/donated
    across forward calls; the kernel only overwrites the n_ctx context rows.
    """
    ctx_dim = token_prefix.shape[-1]
    rows = jnp.concatenate([
        token_prefix.astype(dtype),
        jnp.zeros((n_ctx, ctx_dim), dtype=dtype),
        token_suffix.astype(dtype),
    ], axis=0)                                                # (seq_len, ctx_dim)
    return jnp.tile(rows[None, :, :], (batch, 1, 1))          # materialized (B, seq, ctx_dim)


def _auto_block_b(B, vis_dim, n_ctx, ctx_dim, out_dtype):
    """Generation-aware batch tile: sized from physical VMEM, >=2 grid steps, divides B."""
    try:
        vmem_bytes = int(pltpu.get_tpu_info().vmem_capacity_bytes)   # 64 MiB v7x, 128 MiB v5e/v6e
    except Exception:
        vmem_bytes = 64 << 20
    per_row = (2 * vis_dim * 4                                        # double-buffered x tile (f32)
               + n_ctx * ctx_dim * jnp.dtype(out_dtype).itemsize)     # ctx_shifted scratch
    cap = max(8, (vmem_bytes // 4) // max(per_row, 1))                # use <= 1/4 of VMEM
    cap = (cap // 8) * 8
    block_b = min(cap, B)
    # Keep >= 2 grid steps when the batch allows it (megacore sharding / pipelining).
    if B >= 16 and block_b * 2 > B:
        block_b = max(8, ((B // 2) // 8) * 8)
    # Must divide B exactly (manual DMA writes exact tiles) and stay sublane-friendly.
    while block_b > 8 and B % block_b != 0:
        block_b -= 8
    if B % block_b != 0:
        block_b = B          # single full-batch tile is always a legal BlockSpec
    return block_b


def prompt_learner_forward(im_features, w1, b1, w2, b2, ctx,
                           token_prefix, token_suffix, *,
                           prompt_template=None, block_b=None,
                           out_dtype=None, core_parallel=False):
    """Pallas forward of PromptLearner.

    im_features : (B, vis_dim)          f32
    w1          : (vis_dim, hidden)     f32   (transposed Linear1 weight)
    b1          : (1, hidden)           f32
    w2          : (hidden, ctx_dim)     f32   (transposed Linear2 weight)
    b2          : (1, ctx_dim)          f32
    ctx         : (n_ctx, ctx_dim)      f32
    token_prefix: (1, ctx_dim)          f32   (== embedding[0, :1, :])
    token_suffix: (suffix_len, ctx_dim) f32   (== embedding[0, 1+n_ctx:, :])
    prompt_template: optional cached (B, seq_len, ctx_dim) buffer from
                     make_prompt_template(); donated to the output so only the
                     n_ctx context rows are written by the kernel.
    returns     : (B, 1 + n_ctx + suffix_len, ctx_dim) in `out_dtype` (default bf16)
    """
    B, vis_dim = im_features.shape
    hidden = w1.shape[1]
    n_ctx, ctx_dim = ctx.shape
    suffix_len = token_suffix.shape[0]
    seq_len = 1 + n_ctx + suffix_len

    if out_dtype is None:
        out_dtype = prompt_template.dtype if prompt_template is not None else jnp.bfloat16
    if prompt_template is None:
        prompt_template = make_prompt_template(B, token_prefix, token_suffix, n_ctx, out_dtype)
    assert prompt_template.shape == (B, seq_len, ctx_dim)
    assert prompt_template.dtype == jnp.dtype(out_dtype)

    if block_b is None:
        block_b = _auto_block_b(B, vis_dim, n_ctx, ctx_dim, out_dtype)
    block_b = min(block_b, B)
    assert B % block_b == 0, f"block_b={block_b} must divide B={B} (manual DMA tiles)"
    assert block_b == B or block_b % 8 == 0, "block_b must be a multiple of 8 or equal B"

    grid = (B // block_b,)

    # Explicit scoped-VMEM budget: double-buffered x tile + resident weights/ctx
    # (conservatively counted twice) + ctx_shifted scratch, 1.5x + 4 MiB headroom.
    in_isz = jnp.dtype(im_features.dtype).itemsize
    out_isz = jnp.dtype(out_dtype).itemsize
    tile_bytes = (2 * block_b * vis_dim * in_isz
                  + 2 * 4 * (w1.size + b1.size + w2.size + b2.size + ctx.size)
                  + block_b * n_ctx * ctx_dim * out_isz)
    vmem_limit = int(min(max(int(tile_bytes * 1.5) + (4 << 20), 8 << 20), 100 << 20))

    kernel = functools.partial(_prompt_learner_kernel, n_ctx=n_ctx, block_b=block_b)

    def resident(shape):
        # Full-array block, constant index_map -> DMA'd once, VMEM-resident across steps.
        return pl.BlockSpec(shape, lambda i: (0,) * len(shape))

    dim_sem = (pltpu.CORE_PARALLEL,) if core_parallel else ("parallel",)

    out = pl.pallas_call(
        kernel,
        out_shape=jax.ShapeDtypeStruct((B, seq_len, ctx_dim), out_dtype),
        grid=grid,
        in_specs=[
            pl.BlockSpec((block_b, vis_dim), lambda i: (i, 0)),   # im_features, tiled on B
            resident((vis_dim, hidden)),                          # w1
            resident((1, hidden)),                                # b1
            resident((hidden, ctx_dim)),                          # w2
            resident((1, ctx_dim)),                               # b2
            resident((n_ctx, ctx_dim)),                           # ctx
            pl.BlockSpec(memory_space=pl.ANY),                    # pre-filled prompt template (donated)
        ],
        out_specs=pl.BlockSpec(memory_space=pl.ANY),              # raw HBM; kernel DMAs ctx rows only
        scratch_shapes=[
            pltpu.VMEM((block_b, n_ctx, ctx_dim), out_dtype),     # ctx_shifted staging
            pltpu.SemaphoreType.DMA(()),                          # writeback DMA semaphore
        ],
        input_output_aliases={6: 0},                              # template buffer -> output buffer
        compiler_params=pltpu.CompilerParams(
            dimension_semantics=dim_sem,
            vmem_limit_bytes=vmem_limit,
        ),
    )(im_features, w1, b1, w2, b2, ctx, prompt_template)
    return out


def prompt_learner_reference(im_features, w1, b1, w2, b2, ctx, token_prefix, token_suffix):
    """Pure-JAX reference mirroring the PyTorch forward."""
    bias = jnp.maximum(im_features @ w1 + b1, 0.0) @ w2 + b2           # (B, ctx_dim)
    ctx_shifted = ctx[None, :, :] + bias[:, None, :]                   # (B, n_ctx, ctx_dim)
    B = im_features.shape[0]
    pre = jnp.broadcast_to(token_prefix[None, :, :], (B,) + token_prefix.shape)
    suf = jnp.broadcast_to(token_suffix[None, :, :], (B,) + token_suffix.shape)
    return jnp.concatenate([pre, ctx_shifted, suf], axis=1)


if __name__ == "__main__":
    # Small shapes consistent with the module:
    #   vis_dim=128 -> hidden=vis_dim//16=8, ctx_dim=128 (lane-dense, like real 512),
    #   n_ctx=4, suffix_len=11 -> seq_len=16, batch B=16 (2 grid steps of 8).
    B, vis_dim, ctx_dim, n_ctx, suffix_len = 16, 128, 128, 4, 11
    hidden = vis_dim // 16
    seq_len = 1 + n_ctx + suffix_len

    key = jax.random.PRNGKey(0)
    k = jax.random.split(key, 8)

    im_features = jax.random.normal(k[0], (B, vis_dim), dtype=jnp.float32)
    # ctx_vectors ~ N(0, 0.02) as in nn.init.normal_(ctx_vectors, std=0.02)
    ctx = 0.02 * jax.random.normal(k[1], (n_ctx, ctx_dim), dtype=jnp.float32)
    # meta_net parameters (deterministic synthetic init; stored transposed: (in, out))
    w1 = jax.random.normal(k[2], (vis_dim, hidden), dtype=jnp.float32) / np.sqrt(vis_dim)
    b1 = 0.01 * jax.random.normal(k[3], (1, hidden), dtype=jnp.float32)
    w2 = jax.random.normal(k[4], (hidden, ctx_dim), dtype=jnp.float32) / np.sqrt(hidden)
    b2 = 0.01 * jax.random.normal(k[5], (1, ctx_dim), dtype=jnp.float32)
    # TODO(synk): real module uses clip.tokenize + clip_model.token_embedding for the frozen
    #             prefix/suffix buffers; no Pallas equivalent, so they are synthesized here.
    token_prefix = jax.random.normal(k[6], (1, ctx_dim), dtype=jnp.float32)
    token_suffix = jax.random.normal(k[7], (suffix_len, ctx_dim), dtype=jnp.float32)

    ref = prompt_learner_reference(im_features, w1, b1, w2, b2, ctx,
                                   token_prefix, token_suffix)

    # f32 path: explicit block_b=8 (2 grid steps) with an explicitly built (cacheable,
    # donatable) prompt template; the kernel only writes the ctx rows.
    tmpl_f32 = make_prompt_template(B, token_prefix, token_suffix, n_ctx, jnp.float32)
    out_f32 = prompt_learner_forward(im_features, w1, b1, w2, b2, ctx,
                                     token_prefix, token_suffix,
                                     prompt_template=tmpl_f32,
                                     block_b=8, out_dtype=jnp.float32)
    out_f32 = jax.block_until_ready(out_f32)
    assert out_f32.shape == (B, seq_len, ctx_dim)
    np.testing.assert_allclose(np.asarray(out_f32), np.asarray(ref), rtol=1e-5, atol=1e-5)

    # Default path: bf16 output (halved write traffic), auto block_b from VMEM capacity,
    # template built internally.
    out_bf16 = prompt_learner_forward(im_features, w1, b1, w2, b2, ctx,
                                      token_prefix, token_suffix)
    out_bf16 = jax.block_until_ready(out_bf16)
    assert out_bf16.dtype == jnp.bfloat16
    assert out_bf16.shape == (B, seq_len, ctx_dim)
    np.testing.assert_allclose(np.asarray(out_bf16, dtype=np.float32), np.asarray(ref),
                               rtol=1e-2, atol=1e-2)

    print("KERNEL_OK")
</pallas_src>

<mosaic_0001>
module attributes {stable_mosaic.version = 11 : i64} {
  func.func @_prompt_learner_kernel(%arg0: i32, %arg1: memref<8x128xf32, #tpu.memory_space<vmem>>, %arg2: memref<128x8xf32, #tpu.memory_space<vmem>>, %arg3: memref<1x8xf32, #tpu.memory_space<vmem>>, %arg4: memref<8x128xf32, #tpu.memory_space<vmem>>, %arg5: memref<1x128xf32, #tpu.memory_space<vmem>>, %arg6: memref<4x128xf32, #tpu.memory_space<vmem>>, %arg7: memref<16x16x128xf32, #tpu.memory_space<any>>, %arg8: memref<16x16x128xf32, #tpu.memory_space<any>>, %arg9: memref<8x4x128xf32, #tpu.memory_space<vmem>>, %arg10: memref<!tpu.dma_semaphore, #tpu.memory_space<semaphore_mem>>) attributes {dimension_semantics = [#tpu.dimension_semantics<parallel>], iteration_bounds = array<i64: 2>, scalar_prefetch = 0 : i64, scratch_operands = 2 : i64, tpu.core_type = #tpu.core_type<tc>, window_params = [{transform_indices = @transform_0, window_bounds = array<i64: 8, 128>}, {pipeline_mode = #tpu.pipeline_mode<synchronous>, transform_indices = @transform_1, window_bounds = array<i64: 128, 8>}, {pipeline_mode = #tpu.pipeline_mode<synchronous>, transform_indices = @transform_2, window_bounds = array<i64: 1, 8>}, {pipeline_mode = #tpu.pipeline_mode<synchronous>, transform_indices = @transform_3, window_bounds = array<i64: 8, 128>}, {pipeline_mode = #tpu.pipeline_mode<synchronous>, transform_indices = @transform_4, window_bounds = array<i64: 1, 128>}, {pipeline_mode = #tpu.pipeline_mode<synchronous>, transform_indices = @transform_5, window_bounds = array<i64: 4, 128>}, {}, {}]} {
    %c0 = arith.constant 0 : index
    %c0_0 = arith.constant 0 : index
    %0 = vector.load %arg1[%c0, %c0_0] : memref<8x128xf32, #tpu.memory_space<vmem>>, vector<8x128xf32>
    %c0_1 = arith.constant 0 : index
    %c0_2 = arith.constant 0 : index
    %1 = vector.load %arg2[%c0_1, %c0_2] : memref<128x8xf32, #tpu.memory_space<vmem>>, vector<128x8xf32>
    %cst = arith.constant dense<0.000000e+00> : vector<8x8xf32>
    %2 = tpu.matmul %0, %1, %cst {dimension_numbers = #tpu.dot_dimension_numbers<[1], [0], [0], [1], [0, 0, 1, 1], [], []>} : vector<8x128xf32>, vector<128x8xf32>, vector<8x8xf32> -> vector<8x8xf32>
    %c0_3 = arith.constant 0 : index
    %c0_4 = arith.constant 0 : index
    %3 = vector.load %arg3[%c0_3, %c0_4] : memref<1x8xf32, #tpu.memory_space<vmem>>, vector<1x8xf32>
    %4 = vector.broadcast %3 : vector<1x8xf32> to vector<8x8xf32>
    %5 = arith.addf %2, %4 : vector<8x8xf32>
    %cst_5 = arith.constant 0.000000e+00 : f32
    %6 = vector.broadcast %cst_5 : f32 to vector<8x8xf32>
    %7 = arith.maximumf %5, %6 : vector<8x8xf32>
    %c0_6 = arith.constant 0 : index
    %c0_7 = arith.constant 0 : index
    %8 = vector.load %arg4[%c0_6, %c0_7] : memref<8x128xf32, #tpu.memory_space<vmem>>, vector<8x128xf32>
    %cst_8 = arith.constant dense<0.000000e+00> : vector<8x128xf32>
    %9 = tpu.matmul %7, %8, %cst_8 {dimension_numbers = #tpu.dot_dimension_numbers<[1], [0], [0], [1], [0, 0, 1, 1], [], []>} : vector<8x8xf32>, vector<8x128xf32>, vector<8x128xf32> -> vector<8x128xf32>
    %c0_9 = arith.constant 0 : index
    %c0_10 = arith.constant 0 : index
    %10 = vector.load %arg5[%c0_9, %c0_10] : memref<1x128xf32, #tpu.memory_space<vmem>>, vector<1x128xf32>
    %11 = vector.broadcast %10 : vector<1x128xf32> to vector<8x128xf32>
    %12 = arith.addf %9, %11 : vector<8x128xf32>
    %c0_11 = arith.constant 0 : index
    %c0_12 = arith.constant 0 : index
    %13 = vector.load %arg6[%c0_11, %c0_12] : memref<4x128xf32, #tpu.memory_space<vmem>>, vector<4x128xf32>
    %14 = vector.shape_cast %13 : vector<4x128xf32> to vector<1x4x128xf32>
    %15 = vector.shape_cast %12 : vector<8x128xf32> to vector<8x1x128xf32>
    %16 = vector.broadcast %14 : vector<1x4x128xf32> to vector<8x4x128xf32>
    %17 = vector.broadcast %15 : vector<8x1x128xf32> to vector<8x4x128xf32>
    %18 = arith.addf %16, %17 : vector<8x4x128xf32>
    %c0_13 = arith.constant 0 : index
    %c0_14 = arith.constant 0 : index
    %c0_15 = arith.constant 0 : index
    %19 = vector.load %arg9[%c0_13, %c0_14, %c0_15] : memref<8x4x128xf32, #tpu.memory_space<vmem>>, vector<8x4x128xf32>
    tpu.vector_store %arg9[%c0_13, %c0_14, %c0_15], %18 {strides = array<i32>} : memref<8x4x128xf32, #tpu.memory_space<vmem>>, vector<8x4x128xf32>,
    %c8_i32 = arith.constant 8 : i32
    %20 = arith.muli %arg0, %c8_i32 : i32
    %21 = tpu.assume_multiple %20, 8 : i32
    %c1_i32 = arith.constant 1 : i32
    %c0_i32 = arith.constant 0 : i32
    %22 = tpu.memref_slice %arg8[%21, %c1_i32, %c0_i32] : memref<16x16x128xf32, #tpu.memory_space<any>> -> memref<8x4x128xf32, #tpu.memory_space<any>>
    tpu.enqueue_dma source(%arg9 : memref<8x4x128xf32, #tpu.memory_space<vmem>>) target(%22 : memref<8x4x128xf32, #tpu.memory_space<any>>) target_semaphore(%arg10 : memref<!tpu.dma_semaphore, #tpu.memory_space<semaphore_mem>>)
    %c1_i32_16 = arith.constant 1 : i32
    %c0_i32_17 = arith.constant 0 : i32
    %23 = tpu.memref_slice %arg8[%21, %c1_i32_16, %c0_i32_17] : memref<16x16x128xf32, #tpu.memory_space<any>> -> memref<8x4x128xf32, #tpu.memory_space<any>>
    tpu.wait_dma2 semaphore(%arg10 : memref<!tpu.dma_semaphore, #tpu.memory_space<semaphore_mem>>) src(%arg9 : memref<8x4x128xf32, #tpu.memory_space<vmem>>) dst(%23 : memref<8x4x128xf32, #tpu.memory_space<any>>)
    return
  }
  func.func @transform_0(%arg0: i32) -> (i32, i32) {
    %c0_i32 = arith.constant 0 : i32
    %c0_i32_0 = arith.constant 0 : i32
    return %arg0, %c0_i32 : i32, i32
  }
  func.func @transform_1(%arg0: i32) -> (i32, i32) {
    %c0_i32 = arith.constant 0 : i32
    %c0_i32_0 = arith.constant 0 : i32
    %c0_i32_1 = arith.constant 0 : i32
    return %c0_i32, %c0_i32_0 : i32, i32
  }
  func.func @transform_2(%arg0: i32) -> (i32, i32) {
    %c0_i32 = arith.constant 0 : i32
    %c0_i32_0 = arith.constant 0 : i32
    %c0_i32_1 = arith.constant 0 : i32
    return %c0_i32, %c0_i32_0 : i32, i32
  }
  func.func @transform_3(%arg0: i32) -> (i32, i32) {
    %c0_i32 = arith.constant 0 : i32
    %c0_i32_0 = arith.constant 0 : i32
    %c0_i32_1 = arith.constant 0 : i32
    return %c0_i32, %c0_i32_0 : i32, i32
  }
  func.func @transform_4(%arg0: i32) -> (i32, i32) {
    %c0_i32 = arith.constant 0 : i32
    %c0_i32_0 = arith.constant 0 : i32
    %c0_i32_1 = arith.constant 0 : i32
    return %c0_i32, %c0_i32_0 : i32, i32
  }
  func.func @transform_5(%arg0: i32) -> (i32, i32) {
    %c0_i32 = arith.constant 0 : i32
    %c0_i32_0 = arith.constant 0 : i32
    %c0_i32_1 = arith.constant 0 : i32
    return %c0_i32, %c0_i32_0 : i32, i32
  }
}

</mosaic_0001>

<llo_original>
// kernel: tpu_custom_call.1
$region0: #{tpu_custom_call.1}
  #allocation0 [shape = 'u32[]', space=smem, size = 0x4, offset = 0x4, fixed_abs, tag = 'smem constant byte address 0x4 - core index']
  #allocation1 [shape = 'u32[72,128]{1,0:T(1,128)}', space=vmem, size = 0x9000, scoped, tag = 'internal scratch']
  #allocation2 [shape = 'f32[8,4,128]{2,1,0:T(4,128)}', space=vmem, size = 0x4000, scoped, tag = 'scratch operand']
  #allocation3 [shape = 's32[1]{0}', space=sflag, size = 0x4, scoped, tag = 'scratch operand']
  #allocation4 [shape = 's32[]', space=sflag, size = 0x4, offset = 0, fixed_abs, tag = 'sflag constant byte address 0x0 - dummy sync flag']
  %s0 = inlined_call_operand.vmem [shape: f32[16,128], index: 0, kind: input, shape index: {}]
  %s1 = inlined_call_operand.vmem [shape: f32[128,8], index: 1, kind: input, shape index: {}]
  %s2 = inlined_call_operand.vmem [shape: f32[1,8], index: 2, kind: input, shape index: {}]
  %s3 = inlined_call_operand.vmem [shape: f32[8,128], index: 3, kind: input, shape index: {}]
  %s4 = inlined_call_operand.vmem [shape: f32[1,128], index: 4, kind: input, shape index: {}]
  %s5 = inlined_call_operand.vmem [shape: f32[4,128], index: 5, kind: input, shape index: {}]
  %s6 = inlined_call_operand.hbm [shape: f32[16,16,128], index: 6, kind: input, shape index: {}, may-alias: {6,7}]
  %s7 = inlined_call_operand.hbm [shape: f32[16,16,128], index: 7, kind: output, shape index: {}, may-alias: {6,7}]
  %s8 = sld [smem:[#allocation0]]
  $region45: #{tpu_custom_call.1} parent=0
    _
  %s10 = ssub.s32 1, %s8
  %s11 = scalar_select 0, %s10, %s8
  loop: start=0, step=1, limit=3
  $region2: #{tpu_custom_call.1} parent=0 // loop_pre_header
    _
  $region3: #{tpu_custom_call.1} parent=0 // loop_header
    %s13 = sphi 0, %s17
    %p14 = scmp.ge.s32.totalorder %s13, 3
    %s22 = sphi 0, %s24
    %s25 = sphi 0, %s22
    %s35 = sphi 0, %s25
    %s39 = sphi 0, %s39
    %s41 = sphi 0, %s39
    %s49 = sphi 0, %s41
    %s53 = sphi 0, %s53
    %s55 = sphi 0, %s53
    %s63 = sphi 0, %s55
    %s67 = sphi 0, %s67
    %s69 = sphi 0, %s67
    %s77 = sphi 0, %s69
    %s81 = sphi 0, %s81
    %s83 = sphi 0, %s81
    %s91 = sphi 0, %s83
    %s95 = sphi 0, %s95
    %s97 = sphi 0, %s95
    %s105 = sphi 0, %s97
  $region4: #{tpu_custom_call.1} parent=0 // loop_header_branch
    %16 = sbr.rel (%p14) target = $region8
  $region5: #{tpu_custom_call.1} parent=0 // loop_body
    %s18 = ssub.s32 %s13, 1
    %s19 = sadd.s32 %s13, 1
    %s20 = ssub.s32 %s13, %s19
    %p21 = scmp.eq.s32.totalorder %s20, 0
    %s23 = sadd.s32 %s22, 1
    %s24 = scalar_select %p21, %s22, %s23
    %p26 = pneg %p21
    %p27 = scmp.eq.s32.totalorder %s13, 1
    %p28 = por %p26, %p27
    %p29 = scmp.ne.s32.totalorder %s22, %s25
    %p30 = scmp.eq.s32.totalorder %s13, 0
    %p31 = por %p29, %p30
    %p32 = scmp.ne.s32.totalorder %s22, %s25
    %p33 = scmp.eq.s32.totalorder %s18, 1
    %p34 = por %p32, %p33
    %p36 = scmp.ne.s32.totalorder %s25, %s35
    %p37 = scmp.eq.s32.totalorder %s18, 0
    %p38 = por %p36, %p37
    %s40 = sadd.s32 %s39, 1
    %p42 = scmp.eq.s32.totalorder %s13, 1
    %p43 = scmp.ne.s32.totalorder %s39, %s41
    %p44 = scmp.eq.s32.totalorder %s13, 0
    %p45 = por %p43, %p44
    %p46 = scmp.ne.s32.totalorder %s39, %s41
    %p47 = scmp.eq.s32.totalorder %s18, 1
    %p48 = por %p46, %p47
    %p50 = scmp.ne.s32.totalorder %s41, %s49
    %p51 = scmp.eq.s32.totalorder %s18, 0
    %p52 = por %p50, %p51
    %s54 = sadd.s32 %s53, 1
    %p56 = scmp.eq.s32.totalorder %s13, 1
    %p57 = scmp.ne.s32.totalorder %s53, %s55
    %p58 = scmp.eq.s32.totalorder %s13, 0
    %p59 = por %p57, %p58
    %p60 = scmp.ne.s32.totalorder %s53, %s55
    %p61 = scmp.eq.s32.totalorder %s18, 1
    %p62 = por %p60, %p61
    %p64 = scmp.ne.s32.totalorder %s55, %s63
    %p65 = scmp.eq.s32.totalorder %s18, 0
    %p66 = por %p64, %p65
    %s68 = sadd.s32 %s67, 1
    %p70 = scmp.eq.s32.totalorder %s13, 1
    %p71 = scmp.ne.s32.totalorder %s67, %s69
    %p72 = scmp.eq.s32.totalorder %s13, 0
    %p73 = por %p71, %p72
    %p74 = scmp.ne.s32.totalorder %s67, %s69
    %p75 = scmp.eq.s32.totalorder %s18, 1
    %p76 = por %p74, %p75
    %p78 = scmp.ne.s32.totalorder %s69, %s77
    %p79 = scmp.eq.s32.totalorder %s18, 0
    %p80 = por %p78, %p79
    %s82 = sadd.s32 %s81, 1
    %p84 = scmp.eq.s32.totalorder %s13, 1
    %p85 = scmp.ne.s32.totalorder %s81, %s83
    %p86 = scmp.eq.s32.totalorder %s13, 0
    %p87 = por %p85, %p86
    %p88 = scmp.ne.s32.totalorder %s81, %s83
    %p89 = scmp.eq.s32.totalorder %s18, 1
    %p90 = por %p88, %p89
    %p92 = scmp.ne.s32.totalorder %s83, %s91
    %p93 = scmp.eq.s32.totalorder %s18, 0
    %p94 = por %p92, %p93
    %s96 = sadd.s32 %s95, 1
    %p98 = scmp.eq.s32.totalorder %s13, 1
    %p99 = scmp.ne.s32.totalorder %s95, %s97
    %p100 = scmp.eq.s32.totalorder %s13, 0
    %p101 = por %p99, %p100
    %p102 = scmp.ne.s32.totalorder %s95, %s97
    %p103 = scmp.eq.s32.totalorder %s18, 1
    %p104 = por %p102, %p103
    %p106 = scmp.ne.s32.totalorder %s97, %s105
    %p107 = scmp.eq.s32.totalorder %s18, 0
    %p108 = por %p106, %p107
    %p109 = scmp.le.s32.totalorder 1, %s13
    // Predicated region
    $region9: #{tpu_custom_call.1} parent=5 // pred_check
      %p110 = pneg %p109
    $region10: #{tpu_custom_call.1} parent=5 // pred_check_branch
      %112 = sbr.rel (%p110) target = $region12
    $region11: #{tpu_custom_call.1} parent=5 // pred_region
      %s113 = ssub.s32 %s13, 1
      // Predicated region
      $region13: #{tpu_custom_call.1} parent=11 // pred_check
        %p114 = pneg %p52
      $region14: #{tpu_custom_call.1} parent=11 // pred_check_branch
        %116 = sbr.rel (%p114) target = $region16
      $region15: #{tpu_custom_call.1} parent=11 // pred_region
        _
      $region16: #{tpu_custom_call.1} parent=11 // pred_fallthru
        _
      // Predicated region
      $region17: #{tpu_custom_call.1} parent=11 // pred_check
        %p117 = pneg %p66
      $region18: #{tpu_custom_call.1} parent=11 // pred_check_branch
        %119 = sbr.rel (%p117) target = $region20
      $region19: #{tpu_custom_call.1} parent=11 // pred_region
        _
      $region20: #{tpu_custom_call.1} parent=11 // pred_fallthru
        _
      // Predicated region
      $region21: #{tpu_custom_call.1} parent=11 // pred_check
        %p120 = pneg %p80
      $region22: #{tpu_custom_call.1} parent=11 // pred_check_branch
        %122 = sbr.rel (%p120) target = $region24
      $region23: #{tpu_custom_call.1} parent=11 // pred_region
        _
      $region24: #{tpu_custom_call.1} parent=11 // pred_fallthru
        _
      // Predicated region
      $region25: #{tpu_custom_call.1} parent=11 // pred_check
        %p123 = pneg %p94
      $region26: #{tpu_custom_call.1} parent=11 // pred_check_branch
        %125 = sbr.rel (%p123) target = $region28
      $region27: #{tpu_custom_call.1} parent=11 // pred_region
        _
      $region28: #{tpu_custom_call.1} parent=11 // pred_fallthru
        _
      // Predicated region
      $region29: #{tpu_custom_call.1} parent=11 // pred_check
        %p126 = pneg %p108
      $region30: #{tpu_custom_call.1} parent=11 // pred_check_branch
        %128 = sbr.rel (%p126) target = $region32
      $region31: #{tpu_custom_call.1} parent=11 // pred_region
        _
      $region32: #{tpu_custom_call.1} parent=11 // pred_fallthru
        _
    $region12: #{tpu_custom_call.1} parent=5 // pred_fallthru
      _
    %p129 = scmp.lt.s32.totalorder %s13, 2
    // Predicated region
    $region33: #{tpu_custom_call.1} parent=5 // pred_check
      %p130 = pneg %p129
    $region34: #{tpu_custom_call.1} parent=5 // pred_check_branch
      %132 = sbr.rel (%p130) target = $region36
    $region35: #{tpu_custom_call.1} parent=5 // pred_region
      // Predicated region
      $region37: #{tpu_custom_call.1} parent=35 // pred_check
        %p133 = pneg %p31
      $region38: #{tpu_custom_call.1} parent=35 // pred_check_branch
        %135 = sbr.rel (%p133) target = $region40
      $region39: #{tpu_custom_call.1} parent=35 // pred_region
        %p136 = scmp.lt.s32.totalorder %s13, 1
        %s137 = scalar_select %p136, %s13, 1
        %s138 = smul.addr %s137, 8
        %s139 = scalar_lea.vmem %s0, %s138
      $region40: #{tpu_custom_call.1} parent=35 // pred_fallthru
        _
    $region36: #{tpu_custom_call.1} parent=5 // pred_fallthru
      _
    %p140 = scmp.le.s32.totalorder 1, %s13
    // Predicated region
    $region41: #{tpu_custom_call.1} parent=5 // pred_check
      %p141 = pneg %p140
    $region42: #{tpu_custom_call.1} parent=5 // pred_check_branch
      %143 = sbr.rel (%p141) target = $region44
    $region43: #{tpu_custom_call.1} parent=5 // pred_region
      %s144 = ssub.s32 %s13, 1
      %p145 = scmp.lt.s32.totalorder %s18, 1
      %s146 = scalar_select %p145, %s18, 1
      %s147 = smul.addr %s146, 8
      %s148 = scalar_lea.vmem %s0, %s147
      %p149 = pneg %p38
      %p150 = pneg %p34
      %p151 = pneg %p52
      %p152 = pneg %p48
      %p153 = pneg %p66
      %p154 = pneg %p62
      %p155 = pneg %p80
      %p156 = pneg %p76
      %p157 = pneg %p94
      %p158 = pneg %p90
      %p159 = pneg %p108
      %p160 = pneg %p104
      %p161 = scmp.lt.s32.totalorder %s18, 1
      %s162 = scalar_select %p161, %s18, 1
      %s163 = smul.addr %s162, 8
      %s164 = scalar_lea.vmem %s0, %s163
      %v165 = vld [vmem:[%s164] sm:$0xff]
      %v166 = vld [vmem:[%s1] sm:$0xff]
      %v167 = vld [vmem:[%s1 + $0x8] sm:$0xff]
      %v168 = vld [vmem:[%s1 + $0x10] sm:$0xff]
      %v169 = vld [vmem:[%s1 + $0x18] sm:$0xff]
      %v170 = vld [vmem:[%s1 + $0x20] sm:$0xff]
      %v171 = vld [vmem:[%s1 + $0x28] sm:$0xff]
      %v172 = vld [vmem:[%s1 + $0x30] sm:$0xff]
      %v173 = vld [vmem:[%s1 + $0x38] sm:$0xff]
      %v174 = vld [vmem:[%s1 + $0x40] sm:$0xff]
      %v175 = vld [vmem:[%s1 + $0x48] sm:$0xff]
      %v176 = vld [vmem:[%s1 + $0x50] sm:$0xff]
      %v177 = vld [vmem:[%s1 + $0x58] sm:$0xff]
      %v178 = vld [vmem:[%s1 + $0x60] sm:$0xff]
      %v179 = vld [vmem:[%s1 + $0x68] sm:$0xff]
      %v180 = vld [vmem:[%s1 + $0x70] sm:$0xff]
      %v181 = vld [vmem:[%s1 + $0x78] sm:$0xff]
      %v182 = vld [vmem:[%s2] sm:$0x1]
      %v184 = vperm.slane %v182, 0
      %186 = vmatpush.msra.mxu0 %v181
      %187 = vmatpush.msra.mxu0 %v180
      %188 = vmatpush.msra.mxu0 %v179
      %189 = vmatpush.msra.mxu0 %v178
      %190 = vmatpush.msra.mxu0 %v177
      %191 = vmatpush.msra.mxu0 %v176
      %192 = vmatpush.msra.mxu0 %v175
      %193 = vmatpush.msra.mxu0 %v174
      %194 = vmatpush.msra.mxu0 %v173
      %195 = vmatpush.msra.mxu0 %v172
      %196 = vmatpush.msra.mxu0 %v171
      %197 = vmatpush.msra.mxu0 %v170
      %198 = vmatpush.msra.mxu0 %v169
      %199 = vmatpush.msra.mxu0 %v168
      %200 = vmatpush.msra.mxu0 %v167
      %201 = vmatpush.msra.mxu0 %v166
      %202 = vmatmul.f32.gmra.mxu0 %v165
      %v203 = vpop.f32.mrf.mxu0
      %v204 = vadd.f32 %v184, %v203
      %205 = vdwg.mxu0
      %v206 = vmax.f32 %v204, 0.0
      %v207 = vld [vmem:[%s3] sm:$0xff]
      %v208 = vld [vmem:[%s4] sm:$0x1]
      %v210 = vperm.slane %v208, 0
      %vm212 = vcmask 64512
      %v214 = vsel %vm212, %v206, 0
      %216 = vmatpush.msra.mxu0 0.0
      %217 = vmatpush.msra.mxu0 0.0
      %218 = vmatpush.msra.mxu0 0.0
      %219 = vmatpush.msra.mxu0 0.0
      %220 = vmatpush.msra.mxu0 0.0
      %221 = vmatpush.msra.mxu0 0.0
      %222 = vmatpush.msra.mxu0 0.0
      %223 = vmatpush.msra.mxu0 0.0
      %224 = vmatpush.msra.mxu0 0.0
      %225 = vmatpush.msra.mxu0 0.0
      %226 = vmatpush.msra.mxu0 0.0
      %227 = vmatpush.msra.mxu0 0.0
      %228 = vmatpush.msra.mxu0 0.0
      %229 = vmatpush.msra.mxu0 0.0
      %230 = vmatpush.msra.mxu0 0.0
      %231 = vmatpush.msra.mxu0 %v207
      %232 = vmatmul.f32.gmra.mxu0 %v214
      %v233 = vpop.f32.mrf.mxu0
      %v234 = vadd.f32 %v210, %v233
      %235 = vdwg.mxu0
      %v236 = vld [vmem:[%s5] sm:$0xf]
      %v238 = vrot.slane %v234, 1
      %v239 = vrot.slane %v234, 2
      %v240 = vrot.slane %v234, 3
      %v241 = vrot.slane %v234, 4
      %v242 = vrot.slane %v234, 5
      %v243 = vrot.slane %v234, 6
      %v244 = vrot.slane %v234, 7
      %v245 = vperm.slane %v234, 0
      %v246 = vperm.slane %v238, 0
      %v247 = vperm.slane %v239, 0
      %v248 = vperm.slane %v240, 0
      %v249 = vperm.slane %v241, 0
      %v250 = vperm.slane %v242, 0
      %v251 = vperm.slane %v243, 0
      %v252 = vperm.slane %v244, 0
      %v261 = vadd.f32 %v236, %v245
      %v262 = vadd.f32 %v236, %v246
      %v263 = vadd.f32 %v236, %v247
      %v264 = vadd.f32 %v236, %v248
      %v265 = vadd.f32 %v236, %v249
      %v266 = vadd.f32 %v236, %v250
      %v267 = vadd.f32 %v236, %v251
      %v268 = vadd.f32 %v236, %v252
      %269 = vst [vmem:[#allocation2] sm:$0xf] %v261
      %270 = vst [vmem:[#allocation2 + $0x4] sm:$0xf] %v262
      %271 = vst [vmem:[#allocation2 + $0x8] sm:$0xf] %v263
      %272 = vst [vmem:[#allocation2 + $0xc] sm:$0xf] %v264
      %273 = vst [vmem:[#allocation2 + $0x10] sm:$0xf] %v265
      %274 = vst [vmem:[#allocation2 + $0x14] sm:$0xf] %v266
      %275 = vst [vmem:[#allocation2 + $0x18] sm:$0xf] %v267
      %276 = vst [vmem:[#allocation2 + $0x1c] sm:$0xf] %v268
      %s277 = smul.u32 %s18, 8
      %s278 = smul.u32 %s277, 16
      %s279 = sadd.s32 1, %s278
      %s280 = scalar_lea.hbm %s7, %s279
      %s281 = sshll.u32 [#allocation2], 4
      %s282 = int_to_ptr.vmem [resolvable:$true] %s281
      %s283 = sshll.u32 %s280, 4
      %s284 = int_to_ptr.hbm [resolvable:$true] %s283
      %288 = dma.vmem_to_hbm [thread:$0]  %s282, 512, %s284, [#allocation3], 64, 256, 4
      %s289 = smul.u32 8, 4
      %s290 = smul.u32 %s289, 1
      %s291 = sshll.u32 %s290, 4
      %292 = dma.done [#allocation3], %s291
    $region44: #{tpu_custom_call.1} parent=5 // pred_fallthru
      _
  $region6: #{tpu_custom_call.1} parent=0 // loop_footer
    %s17 = sadd.s32 1, %s13
  $region7: #{tpu_custom_call.1} parent=0 // loop_footer_branch
    %12 = sbr.rel target = $region3
  $region8: #{tpu_custom_call.1} parent=0 // loop_exit
    _
  %293 = vsyncmov [#allocation3]
  %s294 = vpop.sfrf %293
  %p295 = scmp.eq.s32.totalorder %s294, 0
  %p296 = pneg %p295
  %298 = shalt.err (%p296)

</llo_original>
